<compile_context>
chip_gen: v7x
topology: tpu7x:2x2x1
jax: 0.10.0
libtpu: 0.0.40
codegen_flags: <defaults>
</compile_context>

<pallas_src>
import jax
import jax.numpy as jnp
from jax.experimental import pallas as pl
from jax.experimental.pallas import tpu as pltpu

INPUT_SIZE = 4
HIDDEN_SIZE = 64
OUTPUT_SIZE = 1

_CHUNK = 256          # lanes processed per fused inner-loop iteration
_MAX_TB = 65536       # cap on batch-tile lanes (double-buffered tiles ~6 MiB)
_TARGET_STEPS = 8     # aim for ~8 grid steps (>=2 per TensorCore on v7x)


def _cdiv(a, b):
    return -(-a // b)


def _round_up(n, m):
    return _cdiv(n, m) * m


def _weather_mlp_kernel(xT_ref, w1_ref, b1_ref, w2_ref, b2_ref, o_ref):
    # xT_ref: (INPUT_SIZE, TB)           -- batch on the lane axis
    # w1_ref: (HIDDEN_SIZE, INPUT_SIZE)  -- PyTorch fc1.weight layout (out, in)
    # b1_ref: (HIDDEN_SIZE, 1)
    # w2_ref: (HIDDEN_SIZE, 1)           -- fc2.weight as a column
    # b2_ref: (1, 1) scalar in SMEM
    # o_ref : (OUTPUT_SIZE, TB)          -- lane-dense output
    tb = xT_ref.shape[-1]
    n_chunks = tb // _CHUNK  # wrapper guarantees tb % _CHUNK == 0

    # Tiny parameters (~1.3 KB): load once, live in vregs across the chunk loop.
    w1 = w1_ref[...]   # (64, 4)
    b1 = b1_ref[...]   # (64, 1)
    w2 = w2_ref[...]   # (64, 1)
    b2 = b2_ref[0, 0]  # scalar

    @pl.loop(0, n_chunks)
    def _(c):
        off = pl.multiple_of(c * _CHUNK, _CHUNK)
        xc = xT_ref[:, pl.ds(off, _CHUNK)]                    # (4, CHUNK)

        # fc1 + bias: K=4 fully unrolled VPU FMAs (an MXU matmul at K=4 would
        # use <2% of the array); the (64,1) b1 broadcast fuses into the first
        # add instead of materializing a (64, CHUNK) broadcast.
        h = w1[:, 0:1] * xc[0:1, :] + b1                      # (64, CHUNK)
        for k in range(1, INPUT_SIZE):                        # static unroll
            h = h + w1[:, k:k + 1] * xc[k:k + 1, :]
        h = jnp.maximum(h, 0.0)                               # ReLU

        # fc2 (N=1): elementwise scale + sublane (XLU) reduce + scalar bias.
        out = jnp.sum(h * w2, axis=0, keepdims=True) + b2     # (1, CHUNK)
        o_ref[:, pl.ds(off, _CHUNK)] = out.astype(o_ref.dtype)


def _choose_tile(B):
    """Batch tile: multiple of _CHUNK, ~_TARGET_STEPS grid steps, capped at
    _MAX_TB lanes so double-buffered tiles stay tiny vs. VMEM on all TPU
    generations (incl. v5e's 16 MiB default scoped limit)."""
    n_steps = max(1, min(_TARGET_STEPS, _cdiv(B, _CHUNK)))
    tb = _round_up(_cdiv(B, n_steps), _CHUNK)
    return min(tb, _MAX_TB)


def weather_model_forward(x, w1, b1, w2, b2, *, block_batch=None):
    """Forward pass of WeatherModel: relu(x @ W1^T + b1) @ W2^T + b2.

    x : (B, INPUT_SIZE) float32
    w1: (HIDDEN_SIZE, INPUT_SIZE)   -- PyTorch fc1.weight
    b1: (HIDDEN_SIZE,)              -- PyTorch fc1.bias
    w2: (OUTPUT_SIZE, HIDDEN_SIZE)  -- PyTorch fc2.weight
    b2: (OUTPUT_SIZE,)              -- PyTorch fc2.bias
    returns (B, OUTPUT_SIZE) float32
    """
    B = x.shape[0]

    if block_batch is None:
        tb = _choose_tile(B)
    else:
        tb = min(_round_up(block_batch, _CHUNK), _MAX_TB)
    b_pad = _round_up(B, tb)
    grid = (b_pad // tb,)

    # Lane-dense layout: batch on the last (lane) axis, zero-padded to the
    # tile size.  allow_input_fusion below lets XLA fold this pad+transpose
    # into the kernel's input instead of an extra HBM round trip over x.
    xT = jnp.pad(x, ((0, b_pad - B), (0, 0))).T          # (INPUT_SIZE, b_pad)
    b1_col = b1.reshape(HIDDEN_SIZE, 1)                  # (HIDDEN, 1)
    w2_col = w2.reshape(OUTPUT_SIZE, HIDDEN_SIZE).T      # (HIDDEN, 1)
    b2_s = b2.reshape(1, 1)                              # scalar for SMEM

    flops = 2 * B * (INPUT_SIZE * HIDDEN_SIZE + HIDDEN_SIZE * OUTPUT_SIZE)
    bytes_accessed = 4 * (
        B * INPUT_SIZE + B * OUTPUT_SIZE
        + HIDDEN_SIZE * INPUT_SIZE + HIDDEN_SIZE
        + HIDDEN_SIZE * OUTPUT_SIZE + OUTPUT_SIZE
    )

    out_T = pl.pallas_call(
        _weather_mlp_kernel,
        out_shape=jax.ShapeDtypeStruct((OUTPUT_SIZE, b_pad), jnp.float32),
        grid=grid,
        in_specs=[
            pl.BlockSpec((INPUT_SIZE, tb), lambda i: (0, i)),           # x^T tile
            pl.BlockSpec((HIDDEN_SIZE, INPUT_SIZE), lambda i: (0, 0)),  # W1 (VMEM-resident)
            pl.BlockSpec((HIDDEN_SIZE, 1), lambda i: (0, 0)),           # b1 column
            pl.BlockSpec((HIDDEN_SIZE, 1), lambda i: (0, 0)),           # W2 column
            pl.BlockSpec(memory_space=pltpu.MemorySpace.SMEM),          # b2 scalar
        ],
        out_specs=pl.BlockSpec((OUTPUT_SIZE, tb), lambda i: (0, i)),    # lane-dense out
        compiler_params=pltpu.CompilerParams(
            dimension_semantics=("parallel",),  # batch tiles -> both TCs on v7x
            allow_input_fusion=[True, False, False, False, False],
        ),
        cost_estimate=pl.CostEstimate(
            flops=flops, transcendentals=0, bytes_accessed=bytes_accessed),
    )(xT, w1, b1_col, w2_col, b2_s)

    return out_T.T[:B]  # (B, OUTPUT_SIZE)


def init_params(key):
    """Deterministic init mimicking PyTorch Linear's U(-1/sqrt(fan_in), 1/sqrt(fan_in)),
    stored in the native PyTorch (out, in) layouts."""
    k1, k2, k3, k4 = jax.random.split(key, 4)
    bound1 = 1.0 / jnp.sqrt(INPUT_SIZE)
    bound2 = 1.0 / jnp.sqrt(HIDDEN_SIZE)
    w1 = jax.random.uniform(k1, (HIDDEN_SIZE, INPUT_SIZE), jnp.float32, -bound1, bound1)
    b1 = jax.random.uniform(k2, (HIDDEN_SIZE,), jnp.float32, -bound1, bound1)
    w2 = jax.random.uniform(k3, (OUTPUT_SIZE, HIDDEN_SIZE), jnp.float32, -bound2, bound2)
    b2 = jax.random.uniform(k4, (OUTPUT_SIZE,), jnp.float32, -bound2, bound2)
    return w1, b1, w2, b2


def _reference(x, w1, b1, w2, b2):
    # PyTorch semantics: relu(x @ W1^T + b1) @ W2^T + b2.
    return jnp.maximum(x @ w1.T + b1, 0.0) @ w2.T + b2


if __name__ == "__main__":
    key = jax.random.PRNGKey(0)
    kx, kx2, kp = jax.random.split(key, 3)
    w1, b1, w2, b2 = init_params(kp)

    # Small case (single grid step, single chunk).
    batch = 8
    x = jax.random.normal(kx, (batch, INPUT_SIZE), dtype=jnp.float32)
    out = jax.block_until_ready(weather_model_forward(x, w1, b1, w2, b2))
    ref = _reference(x, w1, b1, w2, b2)
    assert out.shape == (batch, OUTPUT_SIZE)
    assert jnp.allclose(out, ref, atol=1e-5, rtol=1e-5)

    # Slightly larger case exercising multiple grid steps and >1 in-kernel
    # chunk per tile (still tiny: 3000 x 4 floats).
    batch2 = 3000
    x2 = jax.random.normal(kx2, (batch2, INPUT_SIZE), dtype=jnp.float32)
    out2 = jax.block_until_ready(weather_model_forward(x2, w1, b1, w2, b2))
    ref2 = _reference(x2, w1, b1, w2, b2)
    assert out2.shape == (batch2, OUTPUT_SIZE)
    assert jnp.allclose(out2, ref2, atol=1e-5, rtol=1e-5)

    print("KERNEL_OK")
</pallas_src>

<mosaic_0001>
module attributes {stable_mosaic.version = 11 : i64} {
  func.func @_weather_mlp_kernel(%arg0: i32, %arg1: memref<4x256xf32, #tpu.memory_space<vmem>>, %arg2: memref<64x4xf32, #tpu.memory_space<vmem>>, %arg3: memref<64x1xf32, #tpu.memory_space<vmem>>, %arg4: memref<64x1xf32, #tpu.memory_space<vmem>>, %arg5: memref<1x1xf32, #tpu.memory_space<smem>>, %arg6: memref<1x256xf32, #tpu.memory_space<vmem>>) attributes {dimension_semantics = [#tpu.dimension_semantics<parallel>], iteration_bounds = array<i64: 1>, scalar_prefetch = 0 : i64, scratch_operands = 0 : i64, tpu.core_type = #tpu.core_type<tc>, window_params = [{transform_indices = @transform_0, window_bounds = array<i64: 4, 256>}, {pipeline_mode = #tpu.pipeline_mode<synchronous>, transform_indices = @transform_1, window_bounds = array<i64: 64, 4>}, {pipeline_mode = #tpu.pipeline_mode<synchronous>, transform_indices = @transform_2, window_bounds = array<i64: 64, 1>}, {pipeline_mode = #tpu.pipeline_mode<synchronous>, transform_indices = @transform_3, window_bounds = array<i64: 64, 1>}, {transform_indices = @transform_4, window_bounds = array<i64: 1, 1>}, {transform_indices = @transform_5, window_bounds = array<i64: 1, 256>}]} {
    %c0 = arith.constant 0 : index
    %c0_0 = arith.constant 0 : index
    %0 = vector.load %arg2[%c0, %c0_0] : memref<64x4xf32, #tpu.memory_space<vmem>>, vector<64x4xf32>
    %c0_1 = arith.constant 0 : index
    %c0_2 = arith.constant 0 : index
    %1 = vector.load %arg3[%c0_1, %c0_2] : memref<64x1xf32, #tpu.memory_space<vmem>>, vector<64x1xf32>
    %c0_3 = arith.constant 0 : index
    %c0_4 = arith.constant 0 : index
    %2 = vector.load %arg4[%c0_3, %c0_4] : memref<64x1xf32, #tpu.memory_space<vmem>>, vector<64x1xf32>
    %c0_5 = arith.constant 0 : index
    %c0_6 = arith.constant 0 : index
    %3 = memref.load %arg5[%c0_5, %c0_6] : memref<1x1xf32, #tpu.memory_space<smem>>
    %c0_i32 = arith.constant 0 : i32
    %c1_i32 = arith.constant 1 : i32
    %4 = arith.muli %c0_i32, %c1_i32 : i32
    %c0_i32_7 = arith.constant 0 : i32
    %5 = arith.addi %c0_i32_7, %4 : i32
    %c256_i32 = arith.constant 256 : i32
    %6 = arith.muli %5, %c256_i32 : i32
    %7 = tpu.assume_multiple %6, 256 : i32
    %c0_8 = arith.constant 0 : index
    %8 = arith.index_cast %7 : i32 to index
    %9 = vector.load %arg1[%c0_8, %8] : memref<4x256xf32, #tpu.memory_space<vmem>>, vector<4x256xf32>
    %10 = vector.extract_strided_slice %0 {offsets = [0, 0], sizes = [64, 1], strides = [1, 1]} : vector<64x4xf32> to vector<64x1xf32>
    %11 = vector.extract_strided_slice %9 {offsets = [0, 0], sizes = [1, 256], strides = [1, 1]} : vector<4x256xf32> to vector<1x256xf32>
    %12 = vector.broadcast %10 : vector<64x1xf32> to vector<64x256xf32>
    %13 = vector.broadcast %11 : vector<1x256xf32> to vector<64x256xf32>
    %14 = arith.mulf %12, %13 : vector<64x256xf32>
    %15 = vector.broadcast %1 : vector<64x1xf32> to vector<64x256xf32>
    %16 = arith.addf %14, %15 : vector<64x256xf32>
    %17 = vector.extract_strided_slice %0 {offsets = [0, 1], sizes = [64, 1], strides = [1, 1]} : vector<64x4xf32> to vector<64x1xf32>
    %18 = vector.extract_strided_slice %9 {offsets = [1, 0], sizes = [1, 256], strides = [1, 1]} : vector<4x256xf32> to vector<1x256xf32>
    %19 = vector.broadcast %17 : vector<64x1xf32> to vector<64x256xf32>
    %20 = vector.broadcast %18 : vector<1x256xf32> to vector<64x256xf32>
    %21 = arith.mulf %19, %20 : vector<64x256xf32>
    %22 = arith.addf %16, %21 : vector<64x256xf32>
    %23 = vector.extract_strided_slice %0 {offsets = [0, 2], sizes = [64, 1], strides = [1, 1]} : vector<64x4xf32> to vector<64x1xf32>
    %24 = vector.extract_strided_slice %9 {offsets = [2, 0], sizes = [1, 256], strides = [1, 1]} : vector<4x256xf32> to vector<1x256xf32>
    %25 = vector.broadcast %23 : vector<64x1xf32> to vector<64x256xf32>
    %26 = vector.broadcast %24 : vector<1x256xf32> to vector<64x256xf32>
    %27 = arith.mulf %25, %26 : vector<64x256xf32>
    %28 = arith.addf %22, %27 : vector<64x256xf32>
    %29 = vector.extract_strided_slice %0 {offsets = [0, 3], sizes = [64, 1], strides = [1, 1]} : vector<64x4xf32> to vector<64x1xf32>
    %30 = vector.extract_strided_slice %9 {offsets = [3, 0], sizes = [1, 256], strides = [1, 1]} : vector<4x256xf32> to vector<1x256xf32>
    %31 = vector.broadcast %29 : vector<64x1xf32> to vector<64x256xf32>
    %32 = vector.broadcast %30 : vector<1x256xf32> to vector<64x256xf32>
    %33 = arith.mulf %31, %32 : vector<64x256xf32>
    %34 = arith.addf %28, %33 : vector<64x256xf32>
    %cst = arith.constant 0.000000e+00 : f32
    %35 = vector.broadcast %cst : f32 to vector<64x256xf32>
    %36 = arith.maximumf %34, %35 : vector<64x256xf32>
    %37 = vector.broadcast %2 : vector<64x1xf32> to vector<64x256xf32>
    %38 = arith.mulf %36, %37 : vector<64x256xf32>
    %cst_9 = arith.constant dense<0.000000e+00> : vector<256xf32>
    %39 = vector.multi_reduction <add>, %38, %cst_9 [0] : vector<64x256xf32> to vector<256xf32>
    %40 = vector.shape_cast %39 : vector<256xf32> to vector<1x256xf32>
    %41 = vector.broadcast %3 : f32 to vector<1x256xf32>
    %42 = arith.addf %40, %41 : vector<1x256xf32>
    %c0_10 = arith.constant 0 : index
    %43 = arith.index_cast %7 : i32 to index
    %44 = vector.load %arg6[%c0_10, %43] : memref<1x256xf32, #tpu.memory_space<vmem>>, vector<1x256xf32>
    tpu.vector_store %arg6[%c0_10, %43], %42 {strides = array<i32>} : memref<1x256xf32, #tpu.memory_space<vmem>>, vector<1x256xf32>,
    %c1_i32_11 = arith.constant 1 : i32
    return
  }
  func.func @transform_0(%arg0: i32) -> (i32, i32) {
    %c0_i32 = arith.constant 0 : i32
    %c0_i32_0 = arith.constant 0 : i32
    return %c0_i32, %arg0 : i32, i32
  }
  func.func @transform_1(%arg0: i32) -> (i32, i32) {
    %c0_i32 = arith.constant 0 : i32
    %c0_i32_0 = arith.constant 0 : i32
    %c0_i32_1 = arith.constant 0 : i32
    return %c0_i32, %c0_i32_0 : i32, i32
  }
  func.func @transform_2(%arg0: i32) -> (i32, i32) {
    %c0_i32 = arith.constant 0 : i32
    %c0_i32_0 = arith.constant 0 : i32
    %c0_i32_1 = arith.constant 0 : i32
    return %c0_i32, %c0_i32_0 : i32, i32
  }
  func.func @transform_3(%arg0: i32) -> (i32, i32) {
    %c0_i32 = arith.constant 0 : i32
    %c0_i32_0 = arith.constant 0 : i32
    %c0_i32_1 = arith.constant 0 : i32
    return %c0_i32, %c0_i32_0 : i32, i32
  }
  func.func @transform_4(%arg0: i32) -> (i32, i32) {
    %c0_i32 = arith.constant 0 : i32
    %c0_i32_0 = arith.constant 0 : i32
    %c0_i32_1 = arith.constant 0 : i32
    return %c0_i32, %c0_i32_0 : i32, i32
  }
  func.func @transform_5(%arg0: i32) -> (i32, i32) {
    %c0_i32 = arith.constant 0 : i32
    %c0_i32_0 = arith.constant 0 : i32
    return %c0_i32, %arg0 : i32, i32
  }
}

</mosaic_0001>

<llo_original>
// kernel: tpu_custom_call.1
$region0: #{tpu_custom_call.1}
  #allocation0 [shape = 'u32[]', space=smem, size = 0x4, offset = 0x4, fixed_abs, tag = 'smem constant byte address 0x4 - core index']
  #allocation1 [shape = 'u32[144,128]{1,0:T(1,128)}', space=vmem, size = 0x12000, scoped, tag = 'internal scratch']
  #allocation2 [shape = 'f32[1,1]{1,0:T(1,128)S(6)}', space=smem, size = 0x200, scoped, tag = 'scoped memory for tpu_custom_call.1']
  %s0 = inlined_call_operand.vmem [shape: f32[4,256], index: 0, kind: input, shape index: {}]
  %s1 = inlined_call_operand.vmem [shape: f32[64,4], index: 1, kind: input, shape index: {}]
  %s2 = inlined_call_operand.vmem [shape: f32[64,1], index: 2, kind: input, shape index: {}]
  %s3 = inlined_call_operand.vmem [shape: f32[64,1], index: 3, kind: input, shape index: {}]
  %s4 = inlined_call_operand.<no memory space> [shape: f32[1,1], index: 4, kind: input, shape index: {}]
  %s5 = inlined_call_operand.hbm [shape: f32[1,256], index: 5, kind: output, shape index: {}]
  %s6 = sld [smem:[#allocation0]]
  $region30: #{tpu_custom_call.1} parent=0
    _
  %s8 = ssub.s32 1, %s6
  %s9 = scalar_select 0, %s8, %s6
  %10 = sst [smem:[#allocation2]] %s4
  $region1: #{tpu_custom_call.1} parent=0
    #allocation3 [shape = 'u8[1024]{0}', space=vmem, size = 0x400, scoped, tag = 'output window, operand 0, single buffered']
    #allocation4 [shape = 's32[1]{0}', space=sflag, size = 0x4, scoped, tag = 'scoped memory for tpu_custom_call.1']
    %11 = vsyncpa [#allocation4], 0
    // Predicated region
    $region2: #{tpu_custom_call.1} parent=1 // pred_check
      _
    $region3: #{tpu_custom_call.1} parent=1 // pred_check_branch
      %13 = sbr.rel (0) target = $region5
    $region4: #{tpu_custom_call.1} parent=1 // pred_region
      _
    $region5: #{tpu_custom_call.1} parent=1 // pred_fallthru
      _
    // Predicated region
    $region6: #{tpu_custom_call.1} parent=1 // pred_check
      _
    $region7: #{tpu_custom_call.1} parent=1 // pred_check_branch
      %15 = sbr.rel (0) target = $region9
    $region8: #{tpu_custom_call.1} parent=1 // pred_region
      _
    $region9: #{tpu_custom_call.1} parent=1 // pred_fallthru
      _
    // Predicated region
    $region10: #{tpu_custom_call.1} parent=1 // pred_check
      _
    $region11: #{tpu_custom_call.1} parent=1 // pred_check_branch
      %17 = sbr.rel (0) target = $region13
    $region12: #{tpu_custom_call.1} parent=1 // pred_region
      _
    $region13: #{tpu_custom_call.1} parent=1 // pred_fallthru
      _
    // Predicated region
    $region14: #{tpu_custom_call.1} parent=1 // pred_check
      _
    $region15: #{tpu_custom_call.1} parent=1 // pred_check_branch
      %19 = sbr.rel (0) target = $region17
    $region16: #{tpu_custom_call.1} parent=1 // pred_region
      _
    $region17: #{tpu_custom_call.1} parent=1 // pred_fallthru
      _
    // Predicated region
    $region18: #{tpu_custom_call.1} parent=1 // pred_check
      _
    $region19: #{tpu_custom_call.1} parent=1 // pred_check_branch
      %21 = sbr.rel (0) target = $region21
    $region20: #{tpu_custom_call.1} parent=1 // pred_region
      _
    $region21: #{tpu_custom_call.1} parent=1 // pred_fallthru
      _
    %v22 = vld [vmem:[%s1] sm:$0xff]
    %v23 = vld [vmem:[%s1 + $0x8] sm:$0xff]
    %v24 = vld [vmem:[%s1 + $0x10] sm:$0xff]
    %v25 = vld [vmem:[%s1 + $0x18] sm:$0xff]
    %v26 = vld [vmem:[%s1 + $0x20] sm:$0xff]
    %v27 = vld [vmem:[%s1 + $0x28] sm:$0xff]
    %v28 = vld [vmem:[%s1 + $0x30] sm:$0xff]
    %v29 = vld [vmem:[%s1 + $0x38] sm:$0xff]
    %v30 = vld [vmem:[%s2] sm:$0xff]
    %v31 = vld [vmem:[%s2 + $0x8] sm:$0xff]
    %v32 = vld [vmem:[%s2 + $0x10] sm:$0xff]
    %v33 = vld [vmem:[%s2 + $0x18] sm:$0xff]
    %v34 = vld [vmem:[%s2 + $0x20] sm:$0xff]
    %v35 = vld [vmem:[%s2 + $0x28] sm:$0xff]
    %v36 = vld [vmem:[%s2 + $0x30] sm:$0xff]
    %v37 = vld [vmem:[%s2 + $0x38] sm:$0xff]
    %v38 = vld [vmem:[%s3] sm:$0xff]
    %v39 = vld [vmem:[%s3 + $0x8] sm:$0xff]
    %v40 = vld [vmem:[%s3 + $0x10] sm:$0xff]
    %v41 = vld [vmem:[%s3 + $0x18] sm:$0xff]
    %v42 = vld [vmem:[%s3 + $0x20] sm:$0xff]
    %v43 = vld [vmem:[%s3 + $0x28] sm:$0xff]
    %v44 = vld [vmem:[%s3 + $0x30] sm:$0xff]
    %v45 = vld [vmem:[%s3 + $0x38] sm:$0xff]
    %s46 = sld [smem:[#allocation2]]
    %v47 = vld [vmem:[%s0] sm:$0xff]
    %49 = vset.pattern.permute.xlu0 0
    %50 = vperm.xlu0 %49, %v22
    %v51 = vpop.permute.xlu0 %50
    %54 = vset.pattern.permute.xlu0 0
    %55 = vperm.xlu0 %54, %v23
    %v56 = vpop.permute.xlu0 %55
    %59 = vset.pattern.permute.xlu0 0
    %60 = vperm.xlu0 %59, %v24
    %v61 = vpop.permute.xlu0 %60
    %64 = vset.pattern.permute.xlu0 0
    %65 = vperm.xlu0 %64, %v25
    %v66 = vpop.permute.xlu0 %65
    %69 = vset.pattern.permute.xlu0 0
    %70 = vperm.xlu0 %69, %v26
    %v71 = vpop.permute.xlu0 %70
    %74 = vset.pattern.permute.xlu0 0
    %75 = vperm.xlu0 %74, %v27
    %v76 = vpop.permute.xlu0 %75
    %79 = vset.pattern.permute.xlu0 0
    %80 = vperm.xlu0 %79, %v28
    %v81 = vpop.permute.xlu0 %80
    %84 = vset.pattern.permute.xlu0 0
    %85 = vperm.xlu0 %84, %v29
    %v86 = vpop.permute.xlu0 %85
    %v89 = vlaneseq
    %v90 = vshrl.u32 %v89, 7
    %v91 = vsub.s32 0, %v90
    %v92 = vrot.slane %v47, %v91
    %v93 = vlaneseq
    %v94 = vshrl.u32 %v93, 7
    %v95 = vsub.s32 4, %v94
    %v96 = vrot.slane %v47, %v95
    %v99 = vlaneseq
    %v100 = vshrl.u32 %v99, 7
    %v101 = vsub.s32 0, %v100
    %v102 = vrot.slane %v92, %v101
    %v103 = vlaneseq
    %v104 = vshrl.u32 %v103, 7
    %v105 = vsub.s32 0, %v104
    %v106 = vrot.slane %v96, %v105
    %v107 = vmul.f32 %v51, %v102
    %v108 = vmul.f32 %v51, %v106
    %v109 = vmul.f32 %v56, %v102
    %v110 = vmul.f32 %v56, %v106
    %v111 = vmul.f32 %v61, %v102
    %v112 = vmul.f32 %v61, %v106
    %v113 = vmul.f32 %v66, %v102
    %v114 = vmul.f32 %v66, %v106
    %v115 = vmul.f32 %v71, %v102
    %v116 = vmul.f32 %v71, %v106
    %v117 = vmul.f32 %v76, %v102
    %v118 = vmul.f32 %v76, %v106
    %v119 = vmul.f32 %v81, %v102
    %v120 = vmul.f32 %v81, %v106
    %v121 = vmul.f32 %v86, %v102
    %v122 = vmul.f32 %v86, %v106
    %124 = vset.pattern.permute.xlu0 0
    %125 = vperm.xlu0 %124, %v30
    %v126 = vpop.permute.xlu0 %125
    %129 = vset.pattern.permute.xlu0 0
    %130 = vperm.xlu0 %129, %v31
    %v131 = vpop.permute.xlu0 %130
    %134 = vset.pattern.permute.xlu0 0
    %135 = vperm.xlu0 %134, %v32
    %v136 = vpop.permute.xlu0 %135
    %139 = vset.pattern.permute.xlu0 0
    %140 = vperm.xlu0 %139, %v33
    %v141 = vpop.permute.xlu0 %140
    %144 = vset.pattern.permute.xlu0 0
    %145 = vperm.xlu0 %144, %v34
    %v146 = vpop.permute.xlu0 %145
    %149 = vset.pattern.permute.xlu0 0
    %150 = vperm.xlu0 %149, %v35
    %v151 = vpop.permute.xlu0 %150
    %154 = vset.pattern.permute.xlu0 0
    %155 = vperm.xlu0 %154, %v36
    %v156 = vpop.permute.xlu0 %155
    %159 = vset.pattern.permute.xlu0 0
    %160 = vperm.xlu0 %159, %v37
    %v161 = vpop.permute.xlu0 %160
    %v163 = vadd.f32 %v107, %v126
    %v164 = vadd.f32 %v108, %v126
    %v165 = vadd.f32 %v109, %v131
    %v166 = vadd.f32 %v110, %v131
    %v167 = vadd.f32 %v111, %v136
    %v168 = vadd.f32 %v112, %v136
    %v169 = vadd.f32 %v113, %v141
    %v170 = vadd.f32 %v114, %v141
    %v171 = vadd.f32 %v115, %v146
    %v172 = vadd.f32 %v116, %v146
    %v173 = vadd.f32 %v117, %v151
    %v174 = vadd.f32 %v118, %v151
    %v175 = vadd.f32 %v119, %v156
    %v176 = vadd.f32 %v120, %v156
    %v177 = vadd.f32 %v121, %v161
    %v178 = vadd.f32 %v122, %v161
    %179 = vset.pattern.permute.xlu0 1
    %180 = vperm.xlu0 %179, %v22
    %v181 = vpop.permute.xlu0 %180
    %183 = vset.pattern.permute.xlu0 1
    %184 = vperm.xlu0 %183, %v23
    %v185 = vpop.permute.xlu0 %184
    %187 = vset.pattern.permute.xlu0 1
    %188 = vperm.xlu0 %187, %v24
    %v189 = vpop.permute.xlu0 %188
    %191 = vset.pattern.permute.xlu0 1
    %192 = vperm.xlu0 %191, %v25
    %v193 = vpop.permute.xlu0 %192
    %195 = vset.pattern.permute.xlu0 1
    %196 = vperm.xlu0 %195, %v26
    %v197 = vpop.permute.xlu0 %196
    %199 = vset.pattern.permute.xlu0 1
    %200 = vperm.xlu0 %199, %v27
    %v201 = vpop.permute.xlu0 %200
    %203 = vset.pattern.permute.xlu0 1
    %204 = vperm.xlu0 %203, %v28
    %v205 = vpop.permute.xlu0 %204
    %207 = vset.pattern.permute.xlu0 1
    %208 = vperm.xlu0 %207, %v29
    %v209 = vpop.permute.xlu0 %208
    %v211 = vlaneseq
    %v212 = vshrl.u32 %v211, 7
    %v213 = vsub.s32 1, %v212
    %v214 = vrot.slane %v47, %v213
    %v215 = vlaneseq
    %v216 = vshrl.u32 %v215, 7
    %v217 = vsub.s32 5, %v216
    %v218 = vrot.slane %v47, %v217
    %v221 = vlaneseq
    %v222 = vshrl.u32 %v221, 7
    %v223 = vsub.s32 1, %v222
    %v224 = vrot.slane %v214, %v223
    %v225 = vlaneseq
    %v226 = vshrl.u32 %v225, 7
    %v227 = vsub.s32 1, %v226
    %v228 = vrot.slane %v218, %v227
    %v229 = vmul.f32 %v181, %v224
    %v230 = vmul.f32 %v181, %v228
    %v231 = vmul.f32 %v185, %v224
    %v232 = vmul.f32 %v185, %v228
    %v233 = vmul.f32 %v189, %v224
    %v234 = vmul.f32 %v189, %v228
    %v235 = vmul.f32 %v193, %v224
    %v236 = vmul.f32 %v193, %v228
    %v237 = vmul.f32 %v197, %v224
    %v238 = vmul.f32 %v197, %v228
    %v239 = vmul.f32 %v201, %v224
    %v240 = vmul.f32 %v201, %v228
    %v241 = vmul.f32 %v205, %v224
    %v242 = vmul.f32 %v205, %v228
    %v243 = vmul.f32 %v209, %v224
    %v244 = vmul.f32 %v209, %v228
    %v245 = vadd.f32 %v163, %v229
    %v246 = vadd.f32 %v164, %v230
    %v247 = vadd.f32 %v165, %v231
    %v248 = vadd.f32 %v166, %v232
    %v249 = vadd.f32 %v167, %v233
    %v250 = vadd.f32 %v168, %v234
    %v251 = vadd.f32 %v169, %v235
    %v252 = vadd.f32 %v170, %v236
    %v253 = vadd.f32 %v171, %v237
    %v254 = vadd.f32 %v172, %v238
    %v255 = vadd.f32 %v173, %v239
    %v256 = vadd.f32 %v174, %v240
    %v257 = vadd.f32 %v175, %v241
    %v258 = vadd.f32 %v176, %v242
    %v259 = vadd.f32 %v177, %v243
    %v260 = vadd.f32 %v178, %v244
    %261 = vset.pattern.permute.xlu0 2
    %262 = vperm.xlu0 %261, %v22
    %v263 = vpop.permute.xlu0 %262
    %265 = vset.pattern.permute.xlu0 2
    %266 = vperm.xlu0 %265, %v23
    %v267 = vpop.permute.xlu0 %266
    %269 = vset.pattern.permute.xlu0 2
    %270 = vperm.xlu0 %269, %v24
    %v271 = vpop.permute.xlu0 %270
    %273 = vset.pattern.permute.xlu0 2
    %274 = vperm.xlu0 %273, %v25
    %v275 = vpop.permute.xlu0 %274
    %277 = vset.pattern.permute.xlu0 2
    %278 = vperm.xlu0 %277, %v26
    %v279 = vpop.permute.xlu0 %278
    %281 = vset.pattern.permute.xlu0 2
    %282 = vperm.xlu0 %281, %v27
    %v283 = vpop.permute.xlu0 %282
    %285 = vset.pattern.permute.xlu0 2
    %286 = vperm.xlu0 %285, %v28
    %v287 = vpop.permute.xlu0 %286
    %289 = vset.pattern.permute.xlu0 2
    %290 = vperm.xlu0 %289, %v29
    %v291 = vpop.permute.xlu0 %290
    %v293 = vlaneseq
    %v294 = vshrl.u32 %v293, 7
    %v295 = vsub.s32 2, %v294
    %v296 = vrot.slane %v47, %v295
    %v297 = vlaneseq
    %v298 = vshrl.u32 %v297, 7
    %v299 = vsub.s32 6, %v298
    %v300 = vrot.slane %v47, %v299
    %v303 = vlaneseq
    %v304 = vshrl.u32 %v303, 7
    %v305 = vsub.s32 2, %v304
    %v306 = vrot.slane %v296, %v305
    %v307 = vlaneseq
    %v308 = vshrl.u32 %v307, 7
    %v309 = vsub.s32 2, %v308
    %v310 = vrot.slane %v300, %v309
    %v311 = vmul.f32 %v263, %v306
    %v312 = vmul.f32 %v263, %v310
    %v313 = vmul.f32 %v267, %v306
    %v314 = vmul.f32 %v267, %v310
    %v315 = vmul.f32 %v271, %v306
    %v316 = vmul.f32 %v271, %v310
    %v317 = vmul.f32 %v275, %v306
    %v318 = vmul.f32 %v275, %v310
    %v319 = vmul.f32 %v279, %v306
    %v320 = vmul.f32 %v279, %v310
    %v321 = vmul.f32 %v283, %v306
    %v322 = vmul.f32 %v283, %v310
    %v323 = vmul.f32 %v287, %v306
    %v324 = vmul.f32 %v287, %v310
    %v325 = vmul.f32 %v291, %v306
    %v326 = vmul.f32 %v291, %v310
    %v327 = vadd.f32 %v245, %v311
    %v328 = vadd.f32 %v246, %v312
    %v329 = vadd.f32 %v247, %v313
    %v330 = vadd.f32 %v248, %v314
    %v331 = vadd.f32 %v249, %v315
    %v332 = vadd.f32 %v250, %v316
    %v333 = vadd.f32 %v251, %v317
    %v334 = vadd.f32 %v252, %v318
    %v335 = vadd.f32 %v253, %v319
    %v336 = vadd.f32 %v254, %v320
    %v337 = vadd.f32 %v255, %v321
    %v338 = vadd.f32 %v256, %v322
    %v339 = vadd.f32 %v257, %v323
    %v340 = vadd.f32 %v258, %v324
    %v341 = vadd.f32 %v259, %v325
    %v342 = vadd.f32 %v260, %v326
    %343 = vset.pattern.permute.xlu0 3
    %344 = vperm.xlu0 %343, %v22
    %v345 = vpop.permute.xlu0 %344
    %347 = vset.pattern.permute.xlu0 3
    %348 = vperm.xlu0 %347, %v23
    %v349 = vpop.permute.xlu0 %348
    %351 = vset.pattern.permute.xlu0 3
    %352 = vperm.xlu0 %351, %v24
    %v353 = vpop.permute.xlu0 %352
    %355 = vset.pattern.permute.xlu0 3
    %356 = vperm.xlu0 %355, %v25
    %v357 = vpop.permute.xlu0 %356
    %359 = vset.pattern.permute.xlu0 3
    %360 = vperm.xlu0 %359, %v26
    %v361 = vpop.permute.xlu0 %360
    %363 = vset.pattern.permute.xlu0 3
    %364 = vperm.xlu0 %363, %v27
    %v365 = vpop.permute.xlu0 %364
    %367 = vset.pattern.permute.xlu0 3
    %368 = vperm.xlu0 %367, %v28
    %v369 = vpop.permute.xlu0 %368
    %371 = vset.pattern.permute.xlu0 3
    %372 = vperm.xlu0 %371, %v29
    %v373 = vpop.permute.xlu0 %372
    %v375 = vlaneseq
    %v376 = vshrl.u32 %v375, 7
    %v377 = vsub.s32 3, %v376
    %v378 = vrot.slane %v47, %v377
    %v379 = vlaneseq
    %v380 = vshrl.u32 %v379, 7
    %v381 = vsub.s32 7, %v380
    %v382 = vrot.slane %v47, %v381
    %v385 = vlaneseq
    %v386 = vshrl.u32 %v385, 7
    %v387 = vsub.s32 3, %v386
    %v388 = vrot.slane %v378, %v387
    %v389 = vlaneseq
    %v390 = vshrl.u32 %v389, 7
    %v391 = vsub.s32 3, %v390
    %v392 = vrot.slane %v382, %v391
    %v393 = vmul.f32 %v345, %v388
    %v394 = vmul.f32 %v345, %v392
    %v395 = vmul.f32 %v349, %v388
    %v396 = vmul.f32 %v349, %v392
    %v397 = vmul.f32 %v353, %v388
    %v398 = vmul.f32 %v353, %v392
    %v399 = vmul.f32 %v357, %v388
    %v400 = vmul.f32 %v357, %v392
    %v401 = vmul.f32 %v361, %v388
    %v402 = vmul.f32 %v361, %v392
    %v403 = vmul.f32 %v365, %v388
    %v404 = vmul.f32 %v365, %v392
    %v405 = vmul.f32 %v369, %v388
    %v406 = vmul.f32 %v369, %v392
    %v407 = vmul.f32 %v373, %v388
    %v408 = vmul.f32 %v373, %v392
    %v409 = vadd.f32 %v327, %v393
    %v410 = vadd.f32 %v328, %v394
    %v411 = vadd.f32 %v329, %v395
    %v412 = vadd.f32 %v330, %v396
    %v413 = vadd.f32 %v331, %v397
    %v414 = vadd.f32 %v332, %v398
    %v415 = vadd.f32 %v333, %v399
    %v416 = vadd.f32 %v334, %v400
    %v417 = vadd.f32 %v335, %v401
    %v418 = vadd.f32 %v336, %v402
    %v419 = vadd.f32 %v337, %v403
    %v420 = vadd.f32 %v338, %v404
    %v421 = vadd.f32 %v339, %v405
    %v422 = vadd.f32 %v340, %v406
    %v423 = vadd.f32 %v341, %v407
    %v424 = vadd.f32 %v342, %v408
    %v425 = vmax.f32 %v409, 0.0
    %v426 = vmax.f32 %v410, 0.0
    %v427 = vmax.f32 %v411, 0.0
    %v428 = vmax.f32 %v412, 0.0
    %v429 = vmax.f32 %v413, 0.0
    %v430 = vmax.f32 %v414, 0.0
    %v431 = vmax.f32 %v415, 0.0
    %v432 = vmax.f32 %v416, 0.0
    %v433 = vmax.f32 %v417, 0.0
    %v434 = vmax.f32 %v418, 0.0
    %v435 = vmax.f32 %v419, 0.0
    %v436 = vmax.f32 %v420, 0.0
    %v437 = vmax.f32 %v421, 0.0
    %v438 = vmax.f32 %v422, 0.0
    %v439 = vmax.f32 %v423, 0.0
    %v440 = vmax.f32 %v424, 0.0
    %442 = vset.pattern.permute.xlu0 0
    %443 = vperm.xlu0 %442, %v38
    %v444 = vpop.permute.xlu0 %443
    %447 = vset.pattern.permute.xlu0 0
    %448 = vperm.xlu0 %447, %v39
    %v449 = vpop.permute.xlu0 %448
    %452 = vset.pattern.permute.xlu0 0
    %453 = vperm.xlu0 %452, %v40
    %v454 = vpop.permute.xlu0 %453
    %457 = vset.pattern.permute.xlu0 0
    %458 = vperm.xlu0 %457, %v41
    %v459 = vpop.permute.xlu0 %458
    %462 = vset.pattern.permute.xlu0 0
    %463 = vperm.xlu0 %462, %v42
    %v464 = vpop.permute.xlu0 %463
    %467 = vset.pattern.permute.xlu0 0
    %468 = vperm.xlu0 %467, %v43
    %v469 = vpop.permute.xlu0 %468
    %472 = vset.pattern.permute.xlu0 0
    %473 = vperm.xlu0 %472, %v44
    %v474 = vpop.permute.xlu0 %473
    %477 = vset.pattern.permute.xlu0 0
    %478 = vperm.xlu0 %477, %v45
    %v479 = vpop.permute.xlu0 %478
    %v481 = vmul.f32 %v425, %v444
    %v482 = vmul.f32 %v426, %v444
    %v483 = vmul.f32 %v427, %v449
    %v484 = vmul.f32 %v428, %v449
    %v485 = vmul.f32 %v429, %v454
    %v486 = vmul.f32 %v430, %v454
    %v487 = vmul.f32 %v431, %v459
    %v488 = vmul.f32 %v432, %v459
    %v489 = vmul.f32 %v433, %v464
    %v490 = vmul.f32 %v434, %v464
    %v491 = vmul.f32 %v435, %v469
    %v492 = vmul.f32 %v436, %v469
    %v493 = vmul.f32 %v437, %v474
    %v494 = vmul.f32 %v438, %v474
    %v495 = vmul.f32 %v439, %v479
    %v496 = vmul.f32 %v440, %v479
    %v497 = vadd.f32 %v481, %v483
    %v498 = vadd.f32 %v497, %v485
    %v499 = vadd.f32 %v498, %v487
    %v500 = vadd.f32 %v499, %v489
    %v501 = vadd.f32 %v500, %v491
    %v502 = vadd.f32 %v501, %v493
    %v503 = vadd.f32 %v502, %v495
    %v504 = vrot.slane %v503, 4
    %v505 = vadd.f32 %v503, %v504
    %v506 = vrot.slane %v505, 2
    %v507 = vadd.f32 %v505, %v506
    %v508 = vrot.slane %v507, 1
    %v509 = vadd.f32 %v507, %v508
    %v510 = vadd.f32 %v482, %v484
    %v511 = vadd.f32 %v510, %v486
    %v512 = vadd.f32 %v511, %v488
    %v513 = vadd.f32 %v512, %v490
    %v514 = vadd.f32 %v513, %v492
    %v515 = vadd.f32 %v514, %v494
    %v516 = vadd.f32 %v515, %v496
    %v517 = vrot.slane %v516, 4
    %v518 = vadd.f32 %v516, %v517
    %v519 = vrot.slane %v518, 2
    %v520 = vadd.f32 %v518, %v519
    %v521 = vrot.slane %v520, 1
    %v522 = vadd.f32 %v520, %v521
    %v523 = vstv %s46
    %v524 = vadd.f32 %v509, %v523
    %v525 = vadd.f32 %v522, %v523
    %v528 = vcombine.low %v524, %v525
    %v530 = vunpack.c.l.s4 1966171168
    %v531 = vunpack.c.0.s8 %v530
    %v532 = vlaneseq
    %v533 = vshrl.u32 %v532, 7
    %v534 = vsub.s32 %v531, %v533
    %v535 = vrot.slane %v528, %v534
    %v537 = vunpack.c.l.s4 1966171168
    %v538 = vunpack.c.0.s8 %v537
    %v539 = vlaneseq
    %v540 = vshrl.u32 %v539, 7
    %v541 = vsub.s32 %v538, %v540
    %v542 = vrot.slane %v535, %v541
    %v544 = vlaneseq
    %vm545 = vcmp.ge.s32.totalorder %v544, 0
    %vm546 = vcmp.lt.s32.totalorder %v544, 256
    %vm547 = vmand %vm545, %vm546
    %548 = vst.msk [vmem:[#allocation3] sm:$0x3] %vm547, %v542
    // Predicated region
    $region22: #{tpu_custom_call.1} parent=1 // pred_check
      _
    $region23: #{tpu_custom_call.1} parent=1 // pred_check_branch
      %550 = sbr.rel (0) target = $region25
    $region24: #{tpu_custom_call.1} parent=1 // pred_region
      %s552 = ssub.s32 32, 32
      %553 = vsyncadd [#allocation4], %s552
      %s555 = sshll.u32 [#allocation3], 4
      %s556 = int_to_ptr.vmem [resolvable:$true] %s555
      %558 = dma.vmem_to_hbm [thread:$0]  %s556, 32, %s5, [#allocation4]
    $region25: #{tpu_custom_call.1} parent=1 // pred_fallthru
      _
    // Predicated region
    $region26: #{tpu_custom_call.1} parent=1 // pred_check
      _
    $region27: #{tpu_custom_call.1} parent=1 // pred_check_branch
      %560 = sbr.rel (0) target = $region29
    $region28: #{tpu_custom_call.1} parent=1 // pred_region
      %561 = dma.done [#allocation4], 32
    $region29: #{tpu_custom_call.1} parent=1 // pred_fallthru
      _
    %562 = vsyncpa [#allocation4], 1

</llo_original>
